<compile_context>
chip_gen: v6e
topology: v6e:2x2x1
jax: 0.10.0
libtpu: 0.0.40
codegen_flags: <defaults>
</compile_context>

<pallas_src>
import functools

import jax
import jax.numpy as jnp
from jax.experimental import pallas as pl
from jax.experimental.pallas import tpu as pltpu


def _round_up(x, m):
    return (x + m - 1) // m * m


def _mlp_fused_kernel(*refs, layer_dims, eps):
    """Fused MLP forward for one batch tile.

    refs = (x_ref, w0_ref, b0_ref, w1_ref, b1_ref, ..., o_ref)
      x_ref : [TB, K0p]           (lane-padded input features)
      wi    : [Kp_i, Np_i]   bi : [1, Np_i]   (lane-padded params)
      o_ref : [TB, Np_last]
    layer_dims: tuple of (true_out_dim, padded_out_dim) per layer.
    """
    x_ref = refs[0]
    o_ref = refs[-1]
    param_refs = refs[1:-1]
    n_layers = len(layer_dims)

    h = x_ref[...].astype(jnp.float32)
    for i, (true_n, pad_n) in enumerate(layer_dims):
        w = param_refs[2 * i][...]
        b = param_refs[2 * i + 1][...]
        # MXU matmul; cast activation to the weight dtype (no-op for f32,
        # bf16 feed for the bf16 path), accumulate in f32.
        out = jnp.dot(h.astype(w.dtype), w, preferred_element_type=jnp.float32)
        out = out + b.astype(jnp.float32)
        if i < n_layers - 1:
            # InstanceNorm1d over the TRUE feature width: biased variance,
            # eps, no affine.  Padded columns contribute zero to the sums
            # (zero weights + zero bias) and are explicitly masked out of the
            # centered values so they normalize to exactly 0.
            inv_n = 1.0 / float(true_n)
            mean = jnp.sum(out, axis=-1, keepdims=True) * inv_n
            centered = out - mean
            if pad_n != true_n:
                col = jax.lax.broadcasted_iota(jnp.int32, centered.shape, 1)
                centered = jnp.where(col < true_n, centered, 0.0)
            var = jnp.sum(centered * centered, axis=-1, keepdims=True) * inv_n
            out = centered * jax.lax.rsqrt(var + eps)
            # ReLU; Dropout(p=0.5) in eval mode == identity.
            h = jnp.maximum(out, 0.0)
        else:
            # Last block: no norm, no activation, eval-mode dropout.
            o_ref[...] = out.astype(o_ref.dtype)


def mlp_forward(x_nchw, params, *, batch_tile=None, param_dtype=None):
    """x_nchw: [B, C, H, W] -> [B, output_dim], fused single-kernel forward.

    params: list of (w [K, N], b [N]) per LinearBlock.
    param_dtype: optionally cast weights (e.g. jnp.bfloat16 on v6e/v7x);
                 accumulation / norm math stays f32 in-kernel.
    """
    B = x_nchw.shape[0]
    x = x_nchw.reshape(B, -1).astype(jnp.float32)  # x.view(x.size(0), -1)
    K0 = x.shape[1]
    n_layers = len(params)
    out_dim = params[-1][0].shape[1]

    params = [(jnp.asarray(w, jnp.float32), jnp.asarray(b, jnp.float32))
              for (w, b) in params]
    if param_dtype is not None:
        params = [(w.astype(param_dtype), b) for (w, b) in params]

    # --- lane-pad every feature axis to a multiple of 128 --------------------
    dims = [K0] + [w.shape[1] for (w, _) in params]          # true widths
    pdims = [_round_up(d, 128) for d in dims]                 # padded widths

    if pdims[0] != K0:
        x = jnp.pad(x, ((0, 0), (0, pdims[0] - K0)))

    padded_params = []
    for i, (w, b) in enumerate(params):
        kp, npad = pdims[i], pdims[i + 1]
        kw, nw = w.shape
        if (kp, npad) != (kw, nw):
            w = jnp.pad(w, ((0, kp - kw), (0, npad - nw)))
        if npad != b.shape[0]:
            b = jnp.pad(b, ((0, npad - b.shape[0]),))
        padded_params.append((w, b.reshape(1, npad)))

    # --- batch padding & tiling: fill sublanes / MXU rows ---------------------
    if batch_tile is None:
        batch_tile = min(_round_up(max(B, 1), 8), 256)
    TB = batch_tile
    Bp = _round_up(B, TB)
    if Bp != B:
        x = jnp.pad(x, ((0, Bp - B), (0, 0)))

    # --- flatten params & build specs -----------------------------------------
    in_specs = [pl.BlockSpec((TB, pdims[0]), lambda i: (i, 0))]
    flat_params = []
    for (w, b) in padded_params:
        flat_params.append(w)
        flat_params.append(b)
        in_specs.append(pl.BlockSpec(w.shape, lambda i: (0, 0)))
        in_specs.append(pl.BlockSpec(b.shape, lambda i: (0, 0)))

    Np = pdims[-1]
    out_spec = pl.BlockSpec((TB, Np), lambda i: (i, 0))

    layer_dims = tuple((dims[i + 1], pdims[i + 1]) for i in range(n_layers))

    # --- cost estimate & explicit VMEM budget ----------------------------------
    flops = 2 * Bp * sum(w.shape[0] * w.shape[1] for (w, _) in padded_params)
    bytes_accessed = (
        x.size * x.dtype.itemsize
        + sum(a.size * a.dtype.itemsize for a in flat_params)
        + Bp * Np * 4
    )
    per_step_bytes = (
        TB * pdims[0] * 4
        + sum(a.size * a.dtype.itemsize for a in flat_params)
        + TB * Np * 4
    )
    # Double-buffered per-step working set + headroom; clamp so it stays within
    # physical VMEM on v7x (64 MiB) as well as v5e/v6e.
    vmem_bytes = int(min(max(2 * per_step_bytes + (2 << 20), 4 << 20), 64 << 20))

    kernel = functools.partial(_mlp_fused_kernel, layer_dims=layer_dims, eps=1e-5)
    out = pl.pallas_call(
        kernel,
        out_shape=jax.ShapeDtypeStruct((Bp, Np), jnp.float32),
        grid=(Bp // TB,),
        in_specs=in_specs,
        out_specs=out_spec,
        compiler_params=pltpu.CompilerParams(
            dimension_semantics=("parallel",),  # shard batch tiles across cores
            vmem_limit_bytes=vmem_bytes,
        ),
        cost_estimate=pl.CostEstimate(
            flops=flops,
            transcendentals=Bp * max(n_layers - 1, 0),
            bytes_accessed=bytes_accessed,
        ),
    )(x, *flat_params)

    return out[:B, :out_dim]


def init_mlp_params(key, input_dim, output_dim, dim, n_blk):
    """Deterministic parameter init matching nn.Linear shapes (stored as [in, out])."""
    dims = [input_dim] + [dim] * (n_blk - 1) + [output_dim]
    params = []
    for i in range(n_blk):
        k_in, k_out = dims[i], dims[i + 1]
        key, kw, kb = jax.random.split(key, 3)
        bound = 1.0 / jnp.sqrt(jnp.float32(k_in))  # PyTorch default Linear init range
        w = jax.random.uniform(kw, (k_in, k_out), jnp.float32, -bound, bound)
        b = jax.random.uniform(kb, (k_out,), jnp.float32, -bound, bound)
        params.append((w, b))
    return params


if __name__ == "__main__":
    key = jax.random.PRNGKey(0)
    kx, kp = jax.random.split(key)

    # MLP(input_dim=C*H*W, output_dim=8, dim=32, n_blk=3, norm='in', activ='relu')
    B, C, H, W = 2, 4, 16, 16
    input_dim = C * H * W
    output_dim = 8
    dim = 32
    n_blk = 3

    x = jax.random.normal(kx, (B, C, H, W), jnp.float32)
    params = init_mlp_params(kp, input_dim, output_dim, dim, n_blk)

    out = mlp_forward(x, params)
    jax.block_until_ready(out)

    # Reference in plain JAX (f32, same InstanceNorm semantics).
    def ref_forward(x_nchw, params):
        xr = x_nchw.reshape(x_nchw.shape[0], -1)
        for i, (w, b) in enumerate(params):
            xr = xr @ w + b
            if i != len(params) - 1:
                mu = xr.mean(-1, keepdims=True)
                var = ((xr - mu) ** 2).mean(-1, keepdims=True)
                xr = (xr - mu) / jnp.sqrt(var + 1e-5)
                xr = jnp.maximum(xr, 0.0)
        return xr

    ref = ref_forward(x, params)
    assert out.shape == (B, output_dim), out.shape
    assert jnp.allclose(out, ref, atol=1e-4, rtol=1e-4), float(jnp.abs(out - ref).max())

    print("KERNEL_OK")
</pallas_src>

<mosaic_0001>
module attributes {stable_mosaic.version = 11 : i64} {
  func.func @_mlp_fused_kernel(%arg0: i32, %arg1: memref<8x1024xf32, #tpu.memory_space<vmem>>, %arg2: memref<1024x128xf32, #tpu.memory_space<vmem>>, %arg3: memref<1x128xf32, #tpu.memory_space<vmem>>, %arg4: memref<128x128xf32, #tpu.memory_space<vmem>>, %arg5: memref<1x128xf32, #tpu.memory_space<vmem>>, %arg6: memref<128x128xf32, #tpu.memory_space<vmem>>, %arg7: memref<1x128xf32, #tpu.memory_space<vmem>>, %arg8: memref<8x128xf32, #tpu.memory_space<vmem>>) attributes {dimension_semantics = [#tpu.dimension_semantics<parallel>], iteration_bounds = array<i64: 1>, scalar_prefetch = 0 : i64, scratch_operands = 0 : i64, tpu.core_type = #tpu.core_type<tc>, window_params = [{transform_indices = @transform_0, window_bounds = array<i64: 8, 1024>}, {pipeline_mode = #tpu.pipeline_mode<synchronous>, transform_indices = @transform_1, window_bounds = array<i64: 1024, 128>}, {pipeline_mode = #tpu.pipeline_mode<synchronous>, transform_indices = @transform_2, window_bounds = array<i64: 1, 128>}, {pipeline_mode = #tpu.pipeline_mode<synchronous>, transform_indices = @transform_3, window_bounds = array<i64: 128, 128>}, {pipeline_mode = #tpu.pipeline_mode<synchronous>, transform_indices = @transform_4, window_bounds = array<i64: 1, 128>}, {pipeline_mode = #tpu.pipeline_mode<synchronous>, transform_indices = @transform_5, window_bounds = array<i64: 128, 128>}, {pipeline_mode = #tpu.pipeline_mode<synchronous>, transform_indices = @transform_6, window_bounds = array<i64: 1, 128>}, {transform_indices = @transform_7, window_bounds = array<i64: 8, 128>}]} {
    %c0 = arith.constant 0 : index
    %c0_0 = arith.constant 0 : index
    %0 = vector.load %arg1[%c0, %c0_0] : memref<8x1024xf32, #tpu.memory_space<vmem>>, vector<8x1024xf32>
    %c0_1 = arith.constant 0 : index
    %c0_2 = arith.constant 0 : index
    %1 = vector.load %arg2[%c0_1, %c0_2] : memref<1024x128xf32, #tpu.memory_space<vmem>>, vector<1024x128xf32>
    %c0_3 = arith.constant 0 : index
    %c0_4 = arith.constant 0 : index
    %2 = vector.load %arg3[%c0_3, %c0_4] : memref<1x128xf32, #tpu.memory_space<vmem>>, vector<1x128xf32>
    %cst = arith.constant dense<0.000000e+00> : vector<8x128xf32>
    %3 = tpu.matmul %0, %1, %cst {dimension_numbers = #tpu.dot_dimension_numbers<[1], [0], [0], [1], [0, 0, 1, 1], [], []>} : vector<8x1024xf32>, vector<1024x128xf32>, vector<8x128xf32> -> vector<8x128xf32>
    %4 = vector.broadcast %2 : vector<1x128xf32> to vector<8x128xf32>
    %5 = arith.addf %3, %4 : vector<8x128xf32>
    %cst_5 = arith.constant dense<0.000000e+00> : vector<8xf32>
    %6 = vector.multi_reduction <add>, %5, %cst_5 [1] : vector<8x128xf32> to vector<8xf32>
    %7 = vector.shape_cast %6 : vector<8xf32> to vector<8x1xf32>
    %cst_6 = arith.constant 3.125000e-02 : f32
    %8 = vector.broadcast %cst_6 : f32 to vector<8x1xf32>
    %9 = arith.mulf %7, %8 : vector<8x1xf32>
    %10 = vector.broadcast %9 : vector<8x1xf32> to vector<8x128xf32>
    %11 = arith.subf %5, %10 : vector<8x128xf32>
    %12 = tpu.iota {dimensions = array<i32: 1>} : vector<8x128xi32>
    %c32_i32 = arith.constant 32 : i32
    %13 = vector.broadcast %c32_i32 : i32 to vector<8x128xi32>
    %14 = arith.cmpi slt, %12, %13 : vector<8x128xi32>
    %cst_7 = arith.constant 0.000000e+00 : f32
    %15 = vector.broadcast %cst_7 : f32 to vector<8x128xf32>
    %16 = arith.select %14, %11, %15 : vector<8x128xi1>, vector<8x128xf32>
    %17 = arith.mulf %16, %16 : vector<8x128xf32>
    %cst_8 = arith.constant dense<0.000000e+00> : vector<8xf32>
    %18 = vector.multi_reduction <add>, %17, %cst_8 [1] : vector<8x128xf32> to vector<8xf32>
    %19 = vector.shape_cast %18 : vector<8xf32> to vector<8x1xf32>
    %cst_9 = arith.constant 3.125000e-02 : f32
    %20 = vector.broadcast %cst_9 : f32 to vector<8x1xf32>
    %21 = arith.mulf %19, %20 : vector<8x1xf32>
    %cst_10 = arith.constant 9.99999974E-6 : f32
    %22 = vector.broadcast %cst_10 : f32 to vector<8x1xf32>
    %23 = arith.addf %21, %22 : vector<8x1xf32>
    %24 = math.rsqrt %23 : vector<8x1xf32>
    %25 = vector.broadcast %24 : vector<8x1xf32> to vector<8x128xf32>
    %26 = arith.mulf %16, %25 : vector<8x128xf32>
    %cst_11 = arith.constant 0.000000e+00 : f32
    %27 = vector.broadcast %cst_11 : f32 to vector<8x128xf32>
    %28 = arith.maximumf %26, %27 : vector<8x128xf32>
    %c0_12 = arith.constant 0 : index
    %c0_13 = arith.constant 0 : index
    %29 = vector.load %arg4[%c0_12, %c0_13] : memref<128x128xf32, #tpu.memory_space<vmem>>, vector<128x128xf32>
    %c0_14 = arith.constant 0 : index
    %c0_15 = arith.constant 0 : index
    %30 = vector.load %arg5[%c0_14, %c0_15] : memref<1x128xf32, #tpu.memory_space<vmem>>, vector<1x128xf32>
    %cst_16 = arith.constant dense<0.000000e+00> : vector<8x128xf32>
    %31 = tpu.matmul %28, %29, %cst_16 {dimension_numbers = #tpu.dot_dimension_numbers<[1], [0], [0], [1], [0, 0, 1, 1], [], []>} : vector<8x128xf32>, vector<128x128xf32>, vector<8x128xf32> -> vector<8x128xf32>
    %32 = vector.broadcast %30 : vector<1x128xf32> to vector<8x128xf32>
    %33 = arith.addf %31, %32 : vector<8x128xf32>
    %cst_17 = arith.constant dense<0.000000e+00> : vector<8xf32>
    %34 = vector.multi_reduction <add>, %33, %cst_17 [1] : vector<8x128xf32> to vector<8xf32>
    %35 = vector.shape_cast %34 : vector<8xf32> to vector<8x1xf32>
    %cst_18 = arith.constant 3.125000e-02 : f32
    %36 = vector.broadcast %cst_18 : f32 to vector<8x1xf32>
    %37 = arith.mulf %35, %36 : vector<8x1xf32>
    %38 = vector.broadcast %37 : vector<8x1xf32> to vector<8x128xf32>
    %39 = arith.subf %33, %38 : vector<8x128xf32>
    %40 = tpu.iota {dimensions = array<i32: 1>} : vector<8x128xi32>
    %c32_i32_19 = arith.constant 32 : i32
    %41 = vector.broadcast %c32_i32_19 : i32 to vector<8x128xi32>
    %42 = arith.cmpi slt, %40, %41 : vector<8x128xi32>
    %cst_20 = arith.constant 0.000000e+00 : f32
    %43 = vector.broadcast %cst_20 : f32 to vector<8x128xf32>
    %44 = arith.select %42, %39, %43 : vector<8x128xi1>, vector<8x128xf32>
    %45 = arith.mulf %44, %44 : vector<8x128xf32>
    %cst_21 = arith.constant dense<0.000000e+00> : vector<8xf32>
    %46 = vector.multi_reduction <add>, %45, %cst_21 [1] : vector<8x128xf32> to vector<8xf32>
    %47 = vector.shape_cast %46 : vector<8xf32> to vector<8x1xf32>
    %cst_22 = arith.constant 3.125000e-02 : f32
    %48 = vector.broadcast %cst_22 : f32 to vector<8x1xf32>
    %49 = arith.mulf %47, %48 : vector<8x1xf32>
    %cst_23 = arith.constant 9.99999974E-6 : f32
    %50 = vector.broadcast %cst_23 : f32 to vector<8x1xf32>
    %51 = arith.addf %49, %50 : vector<8x1xf32>
    %52 = math.rsqrt %51 : vector<8x1xf32>
    %53 = vector.broadcast %52 : vector<8x1xf32> to vector<8x128xf32>
    %54 = arith.mulf %44, %53 : vector<8x128xf32>
    %cst_24 = arith.constant 0.000000e+00 : f32
    %55 = vector.broadcast %cst_24 : f32 to vector<8x128xf32>
    %56 = arith.maximumf %54, %55 : vector<8x128xf32>
    %c0_25 = arith.constant 0 : index
    %c0_26 = arith.constant 0 : index
    %57 = vector.load %arg6[%c0_25, %c0_26] : memref<128x128xf32, #tpu.memory_space<vmem>>, vector<128x128xf32>
    %c0_27 = arith.constant 0 : index
    %c0_28 = arith.constant 0 : index
    %58 = vector.load %arg7[%c0_27, %c0_28] : memref<1x128xf32, #tpu.memory_space<vmem>>, vector<1x128xf32>
    %cst_29 = arith.constant dense<0.000000e+00> : vector<8x128xf32>
    %59 = tpu.matmul %56, %57, %cst_29 {dimension_numbers = #tpu.dot_dimension_numbers<[1], [0], [0], [1], [0, 0, 1, 1], [], []>} : vector<8x128xf32>, vector<128x128xf32>, vector<8x128xf32> -> vector<8x128xf32>
    %60 = vector.broadcast %58 : vector<1x128xf32> to vector<8x128xf32>
    %61 = arith.addf %59, %60 : vector<8x128xf32>
    %c0_30 = arith.constant 0 : index
    %c0_31 = arith.constant 0 : index
    %62 = vector.load %arg8[%c0_30, %c0_31] : memref<8x128xf32, #tpu.memory_space<vmem>>, vector<8x128xf32>
    tpu.vector_store %arg8[%c0_30, %c0_31], %61 {strides = array<i32>} : memref<8x128xf32, #tpu.memory_space<vmem>>, vector<8x128xf32>,
    return
  }
  func.func @transform_0(%arg0: i32) -> (i32, i32) {
    %c0_i32 = arith.constant 0 : i32
    %c0_i32_0 = arith.constant 0 : i32
    return %arg0, %c0_i32 : i32, i32
  }
  func.func @transform_1(%arg0: i32) -> (i32, i32) {
    %c0_i32 = arith.constant 0 : i32
    %c0_i32_0 = arith.constant 0 : i32
    %c0_i32_1 = arith.constant 0 : i32
    return %c0_i32, %c0_i32_0 : i32, i32
  }
  func.func @transform_2(%arg0: i32) -> (i32, i32) {
    %c0_i32 = arith.constant 0 : i32
    %c0_i32_0 = arith.constant 0 : i32
    %c0_i32_1 = arith.constant 0 : i32
    return %c0_i32, %c0_i32_0 : i32, i32
  }
  func.func @transform_3(%arg0: i32) -> (i32, i32) {
    %c0_i32 = arith.constant 0 : i32
    %c0_i32_0 = arith.constant 0 : i32
    %c0_i32_1 = arith.constant 0 : i32
    return %c0_i32, %c0_i32_0 : i32, i32
  }
  func.func @transform_4(%arg0: i32) -> (i32, i32) {
    %c0_i32 = arith.constant 0 : i32
    %c0_i32_0 = arith.constant 0 : i32
    %c0_i32_1 = arith.constant 0 : i32
    return %c0_i32, %c0_i32_0 : i32, i32
  }
  func.func @transform_5(%arg0: i32) -> (i32, i32) {
    %c0_i32 = arith.constant 0 : i32
    %c0_i32_0 = arith.constant 0 : i32
    %c0_i32_1 = arith.constant 0 : i32
    return %c0_i32, %c0_i32_0 : i32, i32
  }
  func.func @transform_6(%arg0: i32) -> (i32, i32) {
    %c0_i32 = arith.constant 0 : i32
    %c0_i32_0 = arith.constant 0 : i32
    %c0_i32_1 = arith.constant 0 : i32
    return %c0_i32, %c0_i32_0 : i32, i32
  }
  func.func @transform_7(%arg0: i32) -> (i32, i32) {
    %c0_i32 = arith.constant 0 : i32
    %c0_i32_0 = arith.constant 0 : i32
    return %arg0, %c0_i32 : i32, i32
  }
}

</mosaic_0001>

<llo_original>
// kernel: tpu_custom_call.1
$region0: #{tpu_custom_call.1}
  #allocation0 [shape = 'u32[]', space=smem, size = 0x4, offset = 0x4, fixed_abs, tag = 'smem constant byte address 0x4 - core index']
  #allocation1 [shape = 'u32[144,128]{1,0:T(1,128)}', space=vmem, size = 0x12000, scoped, tag = 'internal scratch']
  %s0 = inlined_call_operand.hbm [shape: f32[8,1024], index: 0, kind: input, shape index: {}]
  %s1 = inlined_call_operand.hbm [shape: f32[1024,128], index: 1, kind: input, shape index: {}]
  %s2 = inlined_call_operand.vmem [shape: f32[1,128], index: 2, kind: input, shape index: {}]
  %s3 = inlined_call_operand.hbm [shape: f32[128,128], index: 3, kind: input, shape index: {}]
  %s4 = inlined_call_operand.vmem [shape: f32[1,128], index: 4, kind: input, shape index: {}]
  %s5 = inlined_call_operand.hbm [shape: f32[128,128], index: 5, kind: input, shape index: {}]
  %s6 = inlined_call_operand.vmem [shape: f32[1,128], index: 6, kind: input, shape index: {}]
  %s7 = inlined_call_operand.hbm [shape: f32[8,128], index: 7, kind: output, shape index: {}]
  %s8 = sld [smem:[#allocation0]]
  $region54: #{tpu_custom_call.1} parent=0
    _
  %s10 = ssub.s32 1, %s8
  %s11 = scalar_select 0, %s10, %s8
  $region1: #{tpu_custom_call.1} parent=0
    #allocation2 [shape = 'u8[32768]{0}', space=vmem, size = 0x8000, scoped, tag = 'input window, operand 0, single buffered']
    #allocation3 [shape = 's32[1]{0}', space=sflag, size = 0x4, scoped, tag = 'scoped memory for tpu_custom_call.1']
    #allocation4 [shape = 's32[1]{0}', space=sflag, size = 0x4, scoped, tag = 'scoped memory for tpu_custom_call.1']
    #allocation5 [shape = 'u8[524288]{0}', space=vmem, size = 0x80000, scoped, tag = 'input window, operand 1, single buffered']
    #allocation6 [shape = 's32[1]{0}', space=sflag, size = 0x4, scoped, tag = 'scoped memory for tpu_custom_call.1']
    #allocation7 [shape = 'u8[65536]{0}', space=vmem, size = 0x10000, scoped, tag = 'input window, operand 3, single buffered']
    #allocation8 [shape = 'u8[65536]{0}', space=vmem, size = 0x10000, scoped, tag = 'input window, operand 5, single buffered']
    #allocation9 [shape = 's32[1]{0}', space=sflag, size = 0x4, scoped, tag = 'scoped memory for tpu_custom_call.1']
    #allocation10 [shape = 'u8[4096]{0}', space=vmem, size = 0x1000, scoped, tag = 'output window, operand 0, single buffered']
    %12 = vsyncpa [#allocation3], 0
    %13 = vsyncpa [#allocation6], 0
    %14 = vsyncpa [#allocation9], 0
    %15 = vsyncpa [#allocation4], 0
    // Predicated region
    $region2: #{tpu_custom_call.1} parent=1 // pred_check
      _
    $region3: #{tpu_custom_call.1} parent=1 // pred_check_branch
      %17 = sbr.rel (0) target = $region5
    $region4: #{tpu_custom_call.1} parent=1 // pred_region
      %s19 = ssub.s32 1024, 1024
      %20 = vsyncadd [#allocation3], %s19
      %s22 = sshll.u32 [#allocation2], 4
      %s23 = int_to_ptr.vmem [resolvable:$true] %s22
      %25 = dma.hbm_to_vmem [thread:$0]  %s0, 1024, %s23, [#allocation3]
    $region5: #{tpu_custom_call.1} parent=1 // pred_fallthru
      _
    // Predicated region
    $region6: #{tpu_custom_call.1} parent=1 // pred_check
      _
    $region7: #{tpu_custom_call.1} parent=1 // pred_check_branch
      %27 = sbr.rel (0) target = $region9
    $region8: #{tpu_custom_call.1} parent=1 // pred_region
      %s29 = ssub.s32 16384, 16384
      %30 = vsyncadd [#allocation6], %s29
      %s31 = sshll.u32 [#allocation5], 4
      %s32 = int_to_ptr.vmem [resolvable:$true] %s31
      %37 = dma.hbm_to_vmem [thread:$0]  %s1, 16384, %s32, [#allocation6], 128, 128, 8
    $region9: #{tpu_custom_call.1} parent=1 // pred_fallthru
      _
    // Predicated region
    $region10: #{tpu_custom_call.1} parent=1 // pred_check
      _
    $region11: #{tpu_custom_call.1} parent=1 // pred_check_branch
      %39 = sbr.rel (0) target = $region13
    $region12: #{tpu_custom_call.1} parent=1 // pred_region
      _
    $region13: #{tpu_custom_call.1} parent=1 // pred_fallthru
      _
    // Predicated region
    $region14: #{tpu_custom_call.1} parent=1 // pred_check
      _
    $region15: #{tpu_custom_call.1} parent=1 // pred_check_branch
      %41 = sbr.rel (0) target = $region17
    $region16: #{tpu_custom_call.1} parent=1 // pred_region
      %s43 = ssub.s32 2048, 2048
      %44 = vsyncadd [#allocation6], %s43
      %s45 = sshll.u32 [#allocation7], 4
      %s46 = int_to_ptr.vmem [resolvable:$true] %s45
      %51 = dma.hbm_to_vmem [thread:$0]  %s3, 2048, %s46, [#allocation6], 128, 128, 8
    $region17: #{tpu_custom_call.1} parent=1 // pred_fallthru
      _
    // Predicated region
    $region18: #{tpu_custom_call.1} parent=1 // pred_check
      _
    $region19: #{tpu_custom_call.1} parent=1 // pred_check_branch
      %53 = sbr.rel (0) target = $region21
    $region20: #{tpu_custom_call.1} parent=1 // pred_region
      _
    $region21: #{tpu_custom_call.1} parent=1 // pred_fallthru
      _
    // Predicated region
    $region22: #{tpu_custom_call.1} parent=1 // pred_check
      _
    $region23: #{tpu_custom_call.1} parent=1 // pred_check_branch
      %55 = sbr.rel (0) target = $region25
    $region24: #{tpu_custom_call.1} parent=1 // pred_region
      %s57 = ssub.s32 2048, 2048
      %58 = vsyncadd [#allocation9], %s57
      %s59 = sshll.u32 [#allocation8], 4
      %s60 = int_to_ptr.vmem [resolvable:$true] %s59
      %65 = dma.hbm_to_vmem [thread:$0]  %s5, 2048, %s60, [#allocation9], 128, 128, 8
    $region25: #{tpu_custom_call.1} parent=1 // pred_fallthru
      _
    // Predicated region
    $region26: #{tpu_custom_call.1} parent=1 // pred_check
      _
    $region27: #{tpu_custom_call.1} parent=1 // pred_check_branch
      %67 = sbr.rel (0) target = $region29
    $region28: #{tpu_custom_call.1} parent=1 // pred_region
      _
    $region29: #{tpu_custom_call.1} parent=1 // pred_fallthru
      _
    // Predicated region
    $region30: #{tpu_custom_call.1} parent=1 // pred_check
      _
    $region31: #{tpu_custom_call.1} parent=1 // pred_check_branch
      %69 = sbr.rel (0) target = $region33
    $region32: #{tpu_custom_call.1} parent=1 // pred_region
      %70 = dma.done [#allocation3], 1024
    $region33: #{tpu_custom_call.1} parent=1 // pred_fallthru
      _
    // Predicated region
    $region34: #{tpu_custom_call.1} parent=1 // pred_check
      _
    $region35: #{tpu_custom_call.1} parent=1 // pred_check_branch
      %72 = sbr.rel (0) target = $region37
    $region36: #{tpu_custom_call.1} parent=1 // pred_region
      %73 = dma.done [#allocation6], 16384
    $region37: #{tpu_custom_call.1} parent=1 // pred_fallthru
      _
    // Predicated region
    $region38: #{tpu_custom_call.1} parent=1 // pred_check
      _
    $region39: #{tpu_custom_call.1} parent=1 // pred_check_branch
      %75 = sbr.rel (0) target = $region41
    $region40: #{tpu_custom_call.1} parent=1 // pred_region
      %76 = dma.done [#allocation6], 2048
    $region41: #{tpu_custom_call.1} parent=1 // pred_fallthru
      _
    // Predicated region
    $region42: #{tpu_custom_call.1} parent=1 // pred_check
      _
    $region43: #{tpu_custom_call.1} parent=1 // pred_check_branch
      %78 = sbr.rel (0) target = $region45
    $region44: #{tpu_custom_call.1} parent=1 // pred_region
      %79 = dma.done [#allocation9], 2048
    $region45: #{tpu_custom_call.1} parent=1 // pred_fallthru
      _
    %v80 = vld [vmem:[#allocation2] sm:$0xff]
    %v81 = vld [vmem:[#allocation2 + $0x8] sm:$0xff]
    %v82 = vld [vmem:[#allocation2 + $0x10] sm:$0xff]
    %v83 = vld [vmem:[#allocation2 + $0x18] sm:$0xff]
    %v84 = vld [vmem:[#allocation2 + $0x20] sm:$0xff]
    %v85 = vld [vmem:[#allocation2 + $0x28] sm:$0xff]
    %v86 = vld [vmem:[#allocation2 + $0x30] sm:$0xff]
    %v87 = vld [vmem:[#allocation2 + $0x38] sm:$0xff]
    %v88 = vld [vmem:[#allocation5] sm:$0xff]
    %v89 = vld [vmem:[#allocation5 + $0x8] sm:$0xff]
    %v90 = vld [vmem:[#allocation5 + $0x10] sm:$0xff]
    %v91 = vld [vmem:[#allocation5 + $0x18] sm:$0xff]
    %v92 = vld [vmem:[#allocation5 + $0x20] sm:$0xff]
    %v93 = vld [vmem:[#allocation5 + $0x28] sm:$0xff]
    %v94 = vld [vmem:[#allocation5 + $0x30] sm:$0xff]
    %v95 = vld [vmem:[#allocation5 + $0x38] sm:$0xff]
    %v96 = vld [vmem:[#allocation5 + $0x40] sm:$0xff]
    %v97 = vld [vmem:[#allocation5 + $0x48] sm:$0xff]
    %v98 = vld [vmem:[#allocation5 + $0x50] sm:$0xff]
    %v99 = vld [vmem:[#allocation5 + $0x58] sm:$0xff]
    %v100 = vld [vmem:[#allocation5 + $0x60] sm:$0xff]
    %v101 = vld [vmem:[#allocation5 + $0x68] sm:$0xff]
    %v102 = vld [vmem:[#allocation5 + $0x70] sm:$0xff]
    %v103 = vld [vmem:[#allocation5 + $0x78] sm:$0xff]
    %v104 = vld [vmem:[#allocation5 + $0x80] sm:$0xff]
    %v105 = vld [vmem:[#allocation5 + $0x88] sm:$0xff]
    %v106 = vld [vmem:[#allocation5 + $0x90] sm:$0xff]
    %v107 = vld [vmem:[#allocation5 + $0x98] sm:$0xff]
    %v108 = vld [vmem:[#allocation5 + $0xa0] sm:$0xff]
    %v109 = vld [vmem:[#allocation5 + $0xa8] sm:$0xff]
    %v110 = vld [vmem:[#allocation5 + $0xb0] sm:$0xff]
    %v111 = vld [vmem:[#allocation5 + $0xb8] sm:$0xff]
    %v112 = vld [vmem:[#allocation5 + $0xc0] sm:$0xff]
    %v113 = vld [vmem:[#allocation5 + $0xc8] sm:$0xff]
    %v114 = vld [vmem:[#allocation5 + $0xd0] sm:$0xff]
    %v115 = vld [vmem:[#allocation5 + $0xd8] sm:$0xff]
    %v116 = vld [vmem:[#allocation5 + $0xe0] sm:$0xff]
    %v117 = vld [vmem:[#allocation5 + $0xe8] sm:$0xff]
    %v118 = vld [vmem:[#allocation5 + $0xf0] sm:$0xff]
    %v119 = vld [vmem:[#allocation5 + $0xf8] sm:$0xff]
    %v120 = vld [vmem:[#allocation5 + $0x100] sm:$0xff]
    %v121 = vld [vmem:[#allocation5 + $0x108] sm:$0xff]
    %v122 = vld [vmem:[#allocation5 + $0x110] sm:$0xff]
    %v123 = vld [vmem:[#allocation5 + $0x118] sm:$0xff]
    %v124 = vld [vmem:[#allocation5 + $0x120] sm:$0xff]
    %v125 = vld [vmem:[#allocation5 + $0x128] sm:$0xff]
    %v126 = vld [vmem:[#allocation5 + $0x130] sm:$0xff]
    %v127 = vld [vmem:[#allocation5 + $0x138] sm:$0xff]
    %v128 = vld [vmem:[#allocation5 + $0x140] sm:$0xff]
    %v129 = vld [vmem:[#allocation5 + $0x148] sm:$0xff]
    %v130 = vld [vmem:[#allocation5 + $0x150] sm:$0xff]
    %v131 = vld [vmem:[#allocation5 + $0x158] sm:$0xff]
    %v132 = vld [vmem:[#allocation5 + $0x160] sm:$0xff]
    %v133 = vld [vmem:[#allocation5 + $0x168] sm:$0xff]
    %v134 = vld [vmem:[#allocation5 + $0x170] sm:$0xff]
    %v135 = vld [vmem:[#allocation5 + $0x178] sm:$0xff]
    %v136 = vld [vmem:[#allocation5 + $0x180] sm:$0xff]
    %v137 = vld [vmem:[#allocation5 + $0x188] sm:$0xff]
    %v138 = vld [vmem:[#allocation5 + $0x190] sm:$0xff]
    %v139 = vld [vmem:[#allocation5 + $0x198] sm:$0xff]
    %v140 = vld [vmem:[#allocation5 + $0x1a0] sm:$0xff]
    %v141 = vld [vmem:[#allocation5 + $0x1a8] sm:$0xff]
    %v142 = vld [vmem:[#allocation5 + $0x1b0] sm:$0xff]
    %v143 = vld [vmem:[#allocation5 + $0x1b8] sm:$0xff]
    %v144 = vld [vmem:[#allocation5 + $0x1c0] sm:$0xff]
    %v145 = vld [vmem:[#allocation5 + $0x1c8] sm:$0xff]
    %v146 = vld [vmem:[#allocation5 + $0x1d0] sm:$0xff]
    %v147 = vld [vmem:[#allocation5 + $0x1d8] sm:$0xff]
    %v148 = vld [vmem:[#allocation5 + $0x1e0] sm:$0xff]
    %v149 = vld [vmem:[#allocation5 + $0x1e8] sm:$0xff]
    %v150 = vld [vmem:[#allocation5 + $0x1f0] sm:$0xff]
    %v151 = vld [vmem:[#allocation5 + $0x1f8] sm:$0xff]
    %v152 = vld [vmem:[#allocation5 + $0x200] sm:$0xff]
    %v153 = vld [vmem:[#allocation5 + $0x208] sm:$0xff]
    %v154 = vld [vmem:[#allocation5 + $0x210] sm:$0xff]
    %v155 = vld [vmem:[#allocation5 + $0x218] sm:$0xff]
    %v156 = vld [vmem:[#allocation5 + $0x220] sm:$0xff]
    %v157 = vld [vmem:[#allocation5 + $0x228] sm:$0xff]
    %v158 = vld [vmem:[#allocation5 + $0x230] sm:$0xff]
    %v159 = vld [vmem:[#allocation5 + $0x238] sm:$0xff]
    %v160 = vld [vmem:[#allocation5 + $0x240] sm:$0xff]
    %v161 = vld [vmem:[#allocation5 + $0x248] sm:$0xff]
    %v162 = vld [vmem:[#allocation5 + $0x250] sm:$0xff]
    %v163 = vld [vmem:[#allocation5 + $0x258] sm:$0xff]
    %v164 = vld [vmem:[#allocation5 + $0x260] sm:$0xff]
    %v165 = vld [vmem:[#allocation5 + $0x268] sm:$0xff]
    %v166 = vld [vmem:[#allocation5 + $0x270] sm:$0xff]
    %v167 = vld [vmem:[#allocation5 + $0x278] sm:$0xff]
    %v168 = vld [vmem:[#allocation5 + $0x280] sm:$0xff]
    %v169 = vld [vmem:[#allocation5 + $0x288] sm:$0xff]
    %v170 = vld [vmem:[#allocation5 + $0x290] sm:$0xff]
    %v171 = vld [vmem:[#allocation5 + $0x298] sm:$0xff]
    %v172 = vld [vmem:[#allocation5 + $0x2a0] sm:$0xff]
    %v173 = vld [vmem:[#allocation5 + $0x2a8] sm:$0xff]
    %v174 = vld [vmem:[#allocation5 + $0x2b0] sm:$0xff]
    %v175 = vld [vmem:[#allocation5 + $0x2b8] sm:$0xff]
    %v176 = vld [vmem:[#allocation5 + $0x2c0] sm:$0xff]
    %v177 = vld [vmem:[#allocation5 + $0x2c8] sm:$0xff]
    %v178 = vld [vmem:[#allocation5 + $0x2d0] sm:$0xff]
    %v179 = vld [vmem:[#allocation5 + $0x2d8] sm:$0xff]
    %v180 = vld [vmem:[#allocation5 + $0x2e0] sm:$0xff]
    %v181 = vld [vmem:[#allocation5 + $0x2e8] sm:$0xff]
    %v182 = vld [vmem:[#allocation5 + $0x2f0] sm:$0xff]
    %v183 = vld [vmem:[#allocation5 + $0x2f8] sm:$0xff]
    %v184 = vld [vmem:[#allocation5 + $0x300] sm:$0xff]
    %v185 = vld [vmem:[#allocation5 + $0x308] sm:$0xff]
    %v186 = vld [vmem:[#allocation5 + $0x310] sm:$0xff]
    %v187 = vld [vmem:[#allocation5 + $0x318] sm:$0xff]
    %v188 = vld [vmem:[#allocation5 + $0x320] sm:$0xff]
    %v189 = vld [vmem:[#allocation5 + $0x328] sm:$0xff]
    %v190 = vld [vmem:[#allocation5 + $0x330] sm:$0xff]
    %v191 = vld [vmem:[#allocation5 + $0x338] sm:$0xff]
    %v192 = vld [vmem:[#allocation5 + $0x340] sm:$0xff]
    %v193 = vld [vmem:[#allocation5 + $0x348] sm:$0xff]
    %v194 = vld [vmem:[#allocation5 + $0x350] sm:$0xff]
    %v195 = vld [vmem:[#allocation5 + $0x358] sm:$0xff]
    %v196 = vld [vmem:[#allocation5 + $0x360] sm:$0xff]
    %v197 = vld [vmem:[#allocation5 + $0x368] sm:$0xff]
    %v198 = vld [vmem:[#allocation5 + $0x370] sm:$0xff]
    %v199 = vld [vmem:[#allocation5 + $0x378] sm:$0xff]
    %v200 = vld [vmem:[#allocation5 + $0x380] sm:$0xff]
    %v201 = vld [vmem:[#allocation5 + $0x388] sm:$0xff]
    %v202 = vld [vmem:[#allocation5 + $0x390] sm:$0xff]
    %v203 = vld [vmem:[#allocation5 + $0x398] sm:$0xff]
    %v204 = vld [vmem:[#allocation5 + $0x3a0] sm:$0xff]
    %v205 = vld [vmem:[#allocation5 + $0x3a8] sm:$0xff]
    %v206 = vld [vmem:[#allocation5 + $0x3b0] sm:$0xff]
    %v207 = vld [vmem:[#allocation5 + $0x3b8] sm:$0xff]
    %v208 = vld [vmem:[#allocation5 + $0x3c0] sm:$0xff]
    %v209 = vld [vmem:[#allocation5 + $0x3c8] sm:$0xff]
    %v210 = vld [vmem:[#allocation5 + $0x3d0] sm:$0xff]
    %v211 = vld [vmem:[#allocation5 + $0x3d8] sm:$0xff]
    %v212 = vld [vmem:[#allocation5 + $0x3e0] sm:$0xff]
    %v213 = vld [vmem:[#allocation5 + $0x3e8] sm:$0xff]
    %v214 = vld [vmem:[#allocation5 + $0x3f0] sm:$0xff]
    %v215 = vld [vmem:[#allocation5 + $0x3f8] sm:$0xff]
    %v216 = vld [vmem:[%s2] sm:$0x1]
    %v218 = vlaneseq
    %v219 = vshrl.u32 %v218, 7
    %v220 = vsub.s32 0, %v219
    %v221 = vrot.slane %v216, %v220
    %223 = vmatprep.subr.mxu0 0.0
    %224 = vmatpush1.msra.mxu0 %v103
    %225 = vmatprep.subr.mxu0 0.0
    %226 = vmatpush1.msra.mxu0 %v102
    %227 = vmatprep.subr.mxu0 0.0
    %228 = vmatpush1.msra.mxu0 %v101
    %229 = vmatprep.subr.mxu0 0.0
    %230 = vmatpush1.msra.mxu0 %v100
    %231 = vmatprep.subr.mxu0 0.0
    %232 = vmatpush1.msra.mxu0 %v99
    %233 = vmatprep.subr.mxu0 0.0
    %234 = vmatpush1.msra.mxu0 %v98
    %235 = vmatprep.subr.mxu0 0.0
    %236 = vmatpush1.msra.mxu0 %v97
    %237 = vmatprep.subr.mxu0 0.0
    %238 = vmatpush1.msra.mxu0 %v96
    %239 = vmatprep.subr.mxu0 0.0
    %240 = vmatpush1.msra.mxu0 %v95
    %241 = vmatprep.subr.mxu0 0.0
    %242 = vmatpush1.msra.mxu0 %v94
    %243 = vmatprep.subr.mxu0 0.0
    %244 = vmatpush1.msra.mxu0 %v93
    %245 = vmatprep.subr.mxu0 0.0
    %246 = vmatpush1.msra.mxu0 %v92
    %247 = vmatprep.subr.mxu0 0.0
    %248 = vmatpush1.msra.mxu0 %v91
    %249 = vmatprep.subr.mxu0 0.0
    %250 = vmatpush1.msra.mxu0 %v90
    %251 = vmatprep.subr.mxu0 0.0
    %252 = vmatpush1.msra.mxu0 %v89
    %253 = vmatprep.subr.mxu0 0.0
    %254 = vmatpush1.msra.mxu0 %v88
    %255 = vmatprep.subr.mxu0 0.0
    %256 = vmatpush2.msra.mxu0 %v119
    %257 = vmatprep.subr.mxu0 0.0
    %258 = vmatpush2.msra.mxu0 %v118
    %259 = vmatprep.subr.mxu0 0.0
    %260 = vmatpush2.msra.mxu0 %v117
    %261 = vmatprep.subr.mxu0 0.0
    %262 = vmatpush2.msra.mxu0 %v116
    %263 = vmatprep.subr.mxu0 0.0
    %264 = vmatpush2.msra.mxu0 %v115
    %265 = vmatprep.subr.mxu0 0.0
    %266 = vmatpush2.msra.mxu0 %v114
    %267 = vmatprep.subr.mxu0 0.0
    %268 = vmatpush2.msra.mxu0 %v113
    %269 = vmatprep.subr.mxu0 0.0
    %270 = vmatpush2.msra.mxu0 %v112
    %271 = vmatprep.subr.mxu0 0.0
    %272 = vmatpush2.msra.mxu0 %v111
    %273 = vmatprep.subr.mxu0 0.0
    %274 = vmatpush2.msra.mxu0 %v110
    %275 = vmatprep.subr.mxu0 0.0
    %276 = vmatpush2.msra.mxu0 %v109
    %277 = vmatprep.subr.mxu0 0.0
    %278 = vmatpush2.msra.mxu0 %v108
    %279 = vmatprep.subr.mxu0 0.0
    %280 = vmatpush2.msra.mxu0 %v107
    %281 = vmatprep.subr.mxu0 0.0
    %282 = vmatpush2.msra.mxu0 %v106
    %283 = vmatprep.subr.mxu0 0.0
    %284 = vmatpush2.msra.mxu0 %v105
    %285 = vmatprep.subr.mxu0 0.0
    %286 = vmatpush2.msra.mxu0 %v104
    %287 = vmatprep.mubr.f32.mxu0 %v81
    %288 = vmatmul.mubr.f32.gmra.mxu0 %v80
    %v289 = vpop.f32.mrf.mxu0
    %v290 = vadd.f32 %v221, %v289
    %v291 = vpop.f32.mrf.mxu0
    %292 = vdwg.mxu0
    %293 = vmatprep.subr.mxu0 0.0
    %294 = vmatpush1.msra.mxu0 %v135
    %295 = vmatprep.subr.mxu0 0.0
    %296 = vmatpush1.msra.mxu0 %v134
    %297 = vmatprep.subr.mxu0 0.0
    %298 = vmatpush1.msra.mxu0 %v133
    %299 = vmatprep.subr.mxu0 0.0
    %300 = vmatpush1.msra.mxu0 %v132
    %301 = vmatprep.subr.mxu0 0.0
    %302 = vmatpush1.msra.mxu0 %v131
    %303 = vmatprep.subr.mxu0 0.0
    %304 = vmatpush1.msra.mxu0 %v130
    %305 = vmatprep.subr.mxu0 0.0
    %306 = vmatpush1.msra.mxu0 %v129
    %307 = vmatprep.subr.mxu0 0.0
    %308 = vmatpush1.msra.mxu0 %v128
    %309 = vmatprep.subr.mxu0 0.0
    %310 = vmatpush1.msra.mxu0 %v127
    %311 = vmatprep.subr.mxu0 0.0
    %312 = vmatpush1.msra.mxu0 %v126
    %313 = vmatprep.subr.mxu0 0.0
    %314 = vmatpush1.msra.mxu0 %v125
    %315 = vmatprep.subr.mxu0 0.0
    %316 = vmatpush1.msra.mxu0 %v124
    %317 = vmatprep.subr.mxu0 0.0
    %318 = vmatpush1.msra.mxu0 %v123
    %319 = vmatprep.subr.mxu0 0.0
    %320 = vmatpush1.msra.mxu0 %v122
    %321 = vmatprep.subr.mxu0 0.0
    %322 = vmatpush1.msra.mxu0 %v121
    %323 = vmatprep.subr.mxu0 0.0
    %324 = vmatpush1.msra.mxu0 %v120
    %325 = vmatprep.subr.mxu0 0.0
    %326 = vmatpush2.msra.mxu0 %v151
    %327 = vmatprep.subr.mxu0 0.0
    %328 = vmatpush2.msra.mxu0 %v150
    %329 = vmatprep.subr.mxu0 0.0
    %330 = vmatpush2.msra.mxu0 %v149
    %331 = vmatprep.subr.mxu0 0.0
    %332 = vmatpush2.msra.mxu0 %v148
    %333 = vmatprep.subr.mxu0 0.0
    %334 = vmatpush2.msra.mxu0 %v147
    %335 = vmatprep.subr.mxu0 0.0
    %336 = vmatpush2.msra.mxu0 %v146
    %337 = vmatprep.subr.mxu0 0.0
    %338 = vmatpush2.msra.mxu0 %v145
    %339 = vmatprep.subr.mxu0 0.0
    %340 = vmatpush2.msra.mxu0 %v144
    %341 = vmatprep.subr.mxu0 0.0
    %342 = vmatpush2.msra.mxu0 %v143
    %343 = vmatprep.subr.mxu0 0.0
    %344 = vmatpush2.msra.mxu0 %v142
    %345 = vmatprep.subr.mxu0 0.0
    %346 = vmatpush2.msra.mxu0 %v141
    %347 = vmatprep.subr.mxu0 0.0
    %348 = vmatpush2.msra.mxu0 %v140
    %349 = vmatprep.subr.mxu0 0.0
    %350 = vmatpush2.msra.mxu0 %v139
    %351 = vmatprep.subr.mxu0 0.0
    %352 = vmatpush2.msra.mxu0 %v138
    %353 = vmatprep.subr.mxu0 0.0
    %354 = vmatpush2.msra.mxu0 %v137
    %355 = vmatprep.subr.mxu0 0.0
    %356 = vmatpush2.msra.mxu0 %v136
    %357 = vmatprep.mubr.f32.mxu0 %v83
    %358 = vmatmul.mubr.f32.gmra.mxu0 %v82
    %v359 = vpop.f32.mrf.mxu0
    %v360 = vadd.f32 %v290, %v359
    %v361 = vpop.f32.mrf.mxu0
    %362 = vdwg.mxu0
    %363 = vmatprep.subr.mxu0 0.0
    %364 = vmatpush1.msra.mxu0 %v167
    %365 = vmatprep.subr.mxu0 0.0
    %366 = vmatpush1.msra.mxu0 %v166
    %367 = vmatprep.subr.mxu0 0.0
    %368 = vmatpush1.msra.mxu0 %v165
    %369 = vmatprep.subr.mxu0 0.0
    %370 = vmatpush1.msra.mxu0 %v164
    %371 = vmatprep.subr.mxu0 0.0
    %372 = vmatpush1.msra.mxu0 %v163
    %373 = vmatprep.subr.mxu0 0.0
    %374 = vmatpush1.msra.mxu0 %v162
    %375 = vmatprep.subr.mxu0 0.0
    %376 = vmatpush1.msra.mxu0 %v161
    %377 = vmatprep.subr.mxu0 0.0
    %378 = vmatpush1.msra.mxu0 %v160
    %379 = vmatprep.subr.mxu0 0.0
    %380 = vmatpush1.msra.mxu0 %v159
    %381 = vmatprep.subr.mxu0 0.0
    %382 = vmatpush1.msra.mxu0 %v158
    %383 = vmatprep.subr.mxu0 0.0
    %384 = vmatpush1.msra.mxu0 %v157
    %385 = vmatprep.subr.mxu0 0.0
    %386 = vmatpush1.msra.mxu0 %v156
    %387 = vmatprep.subr.mxu0 0.0
    %388 = vmatpush1.msra.mxu0 %v155
    %389 = vmatprep.subr.mxu0 0.0
    %390 = vmatpush1.msra.mxu0 %v154
    %391 = vmatprep.subr.mxu0 0.0
    %392 = vmatpush1.msra.mxu0 %v153
    %393 = vmatprep.subr.mxu0 0.0
    %394 = vmatpush1.msra.mxu0 %v152
    %395 = vmatprep.subr.mxu0 0.0
    %396 = vmatpush2.msra.mxu0 %v183
    %397 = vmatprep.subr.mxu0 0.0
    %398 = vmatpush2.msra.mxu0 %v182
    %399 = vmatprep.subr.mxu0 0.0
    %400 = vmatpush2.msra.mxu0 %v181
    %401 = vmatprep.subr.mxu0 0.0
    %402 = vmatpush2.msra.mxu0 %v180
    %403 = vmatprep.subr.mxu0 0.0
    %404 = vmatpush2.msra.mxu0 %v179
    %405 = vmatprep.subr.mxu0 0.0
    %406 = vmatpush2.msra.mxu0 %v178
    %407 = vmatprep.subr.mxu0 0.0
    %408 = vmatpush2.msra.mxu0 %v177
    %409 = vmatprep.subr.mxu0 0.0
    %410 = vmatpush2.msra.mxu0 %v176
    %411 = vmatprep.subr.mxu0 0.0
    %412 = vmatpush2.msra.mxu0 %v175
    %413 = vmatprep.subr.mxu0 0.0
    %414 = vmatpush2.msra.mxu0 %v174
    %415 = vmatprep.subr.mxu0 0.0
    %416 = vmatpush2.msra.mxu0 %v173
    %417 = vmatprep.subr.mxu0 0.0
    %418 = vmatpush2.msra.mxu0 %v172
    %419 = vmatprep.subr.mxu0 0.0
    %420 = vmatpush2.msra.mxu0 %v171
    %421 = vmatprep.subr.mxu0 0.0
    %422 = vmatpush2.msra.mxu0 %v170
    %423 = vmatprep.subr.mxu0 0.0
    %424 = vmatpush2.msra.mxu0 %v169
    %425 = vmatprep.subr.mxu0 0.0
    %426 = vmatpush2.msra.mxu0 %v168
    %427 = vmatprep.mubr.f32.mxu0 %v85
    %428 = vmatmul.mubr.f32.gmra.mxu0 %v84
    %v429 = vpop.f32.mrf.mxu0
    %v430 = vadd.f32 %v360, %v429
    %v431 = vpop.f32.mrf.mxu0
    %432 = vdwg.mxu0
    %433 = vmatprep.subr.mxu0 0.0
    %434 = vmatpush1.msra.mxu0 %v199
    %435 = vmatprep.subr.mxu0 0.0
    %436 = vmatpush1.msra.mxu0 %v198
    %437 = vmatprep.subr.mxu0 0.0
    %438 = vmatpush1.msra.mxu0 %v197
    %439 = vmatprep.subr.mxu0 0.0
    %440 = vmatpush1.msra.mxu0 %v196
    %441 = vmatprep.subr.mxu0 0.0
    %442 = vmatpush1.msra.mxu0 %v195
    %443 = vmatprep.subr.mxu0 0.0
    %444 = vmatpush1.msra.mxu0 %v194
    %445 = vmatprep.subr.mxu0 0.0
    %446 = vmatpush1.msra.mxu0 %v193
    %447 = vmatprep.subr.mxu0 0.0
    %448 = vmatpush1.msra.mxu0 %v192
    %449 = vmatprep.subr.mxu0 0.0
    %450 = vmatpush1.msra.mxu0 %v191
    %451 = vmatprep.subr.mxu0 0.0
    %452 = vmatpush1.msra.mxu0 %v190
    %453 = vmatprep.subr.mxu0 0.0
    %454 = vmatpush1.msra.mxu0 %v189
    %455 = vmatprep.subr.mxu0 0.0
    %456 = vmatpush1.msra.mxu0 %v188
    %457 = vmatprep.subr.mxu0 0.0
    %458 = vmatpush1.msra.mxu0 %v187
    %459 = vmatprep.subr.mxu0 0.0
    %460 = vmatpush1.msra.mxu0 %v186
    %461 = vmatprep.subr.mxu0 0.0
    %462 = vmatpush1.msra.mxu0 %v185
    %463 = vmatprep.subr.mxu0 0.0
    %464 = vmatpush1.msra.mxu0 %v184
    %465 = vmatprep.subr.mxu0 0.0
    %466 = vmatpush2.msra.mxu0 %v215
    %467 = vmatprep.subr.mxu0 0.0
    %468 = vmatpush2.msra.mxu0 %v214
    %469 = vmatprep.subr.mxu0 0.0
    %470 = vmatpush2.msra.mxu0 %v213
    %471 = vmatprep.subr.mxu0 0.0
    %472 = vmatpush2.msra.mxu0 %v212
    %473 = vmatprep.subr.mxu0 0.0
    %474 = vmatpush2.msra.mxu0 %v211
    %475 = vmatprep.subr.mxu0 0.0
    %476 = vmatpush2.msra.mxu0 %v210
    %477 = vmatprep.subr.mxu0 0.0
    %478 = vmatpush2.msra.mxu0 %v209
    %479 = vmatprep.subr.mxu0 0.0
    %480 = vmatpush2.msra.mxu0 %v208
    %481 = vmatprep.subr.mxu0 0.0
    %482 = vmatpush2.msra.mxu0 %v207
    %483 = vmatprep.subr.mxu0 0.0
    %484 = vmatpush2.msra.mxu0 %v206
    %485 = vmatprep.subr.mxu0 0.0
    %486 = vmatpush2.msra.mxu0 %v205
    %487 = vmatprep.subr.mxu0 0.0
    %488 = vmatpush2.msra.mxu0 %v204
    %489 = vmatprep.subr.mxu0 0.0
    %490 = vmatpush2.msra.mxu0 %v203
    %491 = vmatprep.subr.mxu0 0.0
    %492 = vmatpush2.msra.mxu0 %v202
    %493 = vmatprep.subr.mxu0 0.0
    %494 = vmatpush2.msra.mxu0 %v201
    %495 = vmatprep.subr.mxu0 0.0
    %496 = vmatpush2.msra.mxu0 %v200
    %497 = vmatprep.mubr.f32.mxu0 %v87
    %498 = vmatmul.mubr.f32.gmra.mxu0 %v86
    %v499 = vpop.f32.mrf.mxu0
    %v500 = vadd.f32 %v430, %v499
    %v501 = vpop.f32.mrf.mxu0
    %502 = vdwg.mxu0
    %503 = vadd.xlane.f32.xlu0 %v500
    %v504 = vpop.xlane.xlu0 %503
    %v505 = vmul.f32 %v504, 0.03125
    %v506 = vsub.f32 %v500, %v505
    %v507 = vlaneseq
    %v508 = vand.u32 %v507, 127
    %vm509 = vcmp.lt.s32.totalorder %v508, 32
    %v510 = vsel %vm509, %v506, 0.0
    %v511 = vmul.f32 %v510, %v510
    %512 = vadd.xlane.f32.xlu0 %v511
    %v513 = vpop.xlane.xlu0 %512
    %v514 = vmul.f32 %v513, 0.03125
    %v515 = vadd.f32 %v514, 1e-05
    %v516 = vrsqrt.pop %v515
    %v517 = vmul.f32 %v510, %v516
    %v518 = vmax.f32 %v517, 0.0
    %v519 = vld [vmem:[#allocation7] sm:$0xff]
    %v520 = vld [vmem:[#allocation7 + $0x8] sm:$0xff]
    %v521 = vld [vmem:[#allocation7 + $0x10] sm:$0xff]
    %v522 = vld [vmem:[#allocation7 + $0x18] sm:$0xff]
    %v523 = vld [vmem:[#allocation7 + $0x20] sm:$0xff]
    %v524 = vld [vmem:[#allocation7 + $0x28] sm:$0xff]
    %v525 = vld [vmem:[#allocation7 + $0x30] sm:$0xff]
    %v526 = vld [vmem:[#allocation7 + $0x38] sm:$0xff]
    %v527 = vld [vmem:[#allocation7 + $0x40] sm:$0xff]
    %v528 = vld [vmem:[#allocation7 + $0x48] sm:$0xff]
    %v529 = vld [vmem:[#allocation7 + $0x50] sm:$0xff]
    %v530 = vld [vmem:[#allocation7 + $0x58] sm:$0xff]
    %v531 = vld [vmem:[#allocation7 + $0x60] sm:$0xff]
    %v532 = vld [vmem:[#allocation7 + $0x68] sm:$0xff]
    %v533 = vld [vmem:[#allocation7 + $0x70] sm:$0xff]
    %v534 = vld [vmem:[#allocation7 + $0x78] sm:$0xff]
    %v535 = vld [vmem:[%s4] sm:$0x1]
    %v537 = vlaneseq
    %v538 = vshrl.u32 %v537, 7
    %v539 = vsub.s32 0, %v538
    %v540 = vrot.slane %v535, %v539
    %542 = vmatprep.subr.mxu0 0.0
    %543 = vmatpush1.msra.mxu0 %v534
    %544 = vmatprep.subr.mxu0 0.0
    %545 = vmatpush1.msra.mxu0 %v533
    %546 = vmatprep.subr.mxu0 0.0
    %547 = vmatpush1.msra.mxu0 %v532
    %548 = vmatprep.subr.mxu0 0.0
    %549 = vmatpush1.msra.mxu0 %v531
    %550 = vmatprep.subr.mxu0 0.0
    %551 = vmatpush1.msra.mxu0 %v530
    %552 = vmatprep.subr.mxu0 0.0
    %553 = vmatpush1.msra.mxu0 %v529
    %554 = vmatprep.subr.mxu0 0.0
    %555 = vmatpush1.msra.mxu0 %v528
    %556 = vmatprep.subr.mxu0 0.0
    %557 = vmatpush1.msra.mxu0 %v527
    %558 = vmatprep.subr.mxu0 0.0
    %559 = vmatpush1.msra.mxu0 %v526
    %560 = vmatprep.subr.mxu0 0.0
    %561 = vmatpush1.msra.mxu0 %v525
    %562 = vmatprep.subr.mxu0 0.0
    %563 = vmatpush1.msra.mxu0 %v524
    %564 = vmatprep.subr.mxu0 0.0
    %565 = vmatpush1.msra.mxu0 %v523
    %566 = vmatprep.subr.mxu0 0.0
    %567 = vmatpush1.msra.mxu0 %v522
    %568 = vmatprep.subr.mxu0 0.0
    %569 = vmatpush1.msra.mxu0 %v521
    %570 = vmatprep.subr.mxu0 0.0
    %571 = vmatpush1.msra.mxu0 %v520
    %572 = vmatprep.subr.mxu0 0.0
    %573 = vmatpush1.msra.mxu0 %v519
    %574 = vmatprep.subr.mxu0 0.0
    %575 = vmatpush2.msra.mxu0 0.0
    %576 = vmatprep.subr.mxu0 0.0
    %577 = vmatpush2.msra.mxu0 0.0
    %578 = vmatprep.subr.mxu0 0.0
    %579 = vmatpush2.msra.mxu0 0.0
    %580 = vmatprep.subr.mxu0 0.0
    %581 = vmatpush2.msra.mxu0 0.0
    %582 = vmatprep.subr.mxu0 0.0
    %583 = vmatpush2.msra.mxu0 0.0
    %584 = vmatprep.subr.mxu0 0.0
    %585 = vmatpush2.msra.mxu0 0.0
    %586 = vmatprep.subr.mxu0 0.0
    %587 = vmatpush2.msra.mxu0 0.0
    %588 = vmatprep.subr.mxu0 0.0
    %589 = vmatpush2.msra.mxu0 0.0
    %590 = vmatprep.subr.mxu0 0.0
    %591 = vmatpush2.msra.mxu0 0.0
    %592 = vmatprep.subr.mxu0 0.0
    %593 = vmatpush2.msra.mxu0 0.0
    %594 = vmatprep.subr.mxu0 0.0
    %595 = vmatpush2.msra.mxu0 0.0
    %596 = vmatprep.subr.mxu0 0.0
    %597 = vmatpush2.msra.mxu0 0.0
    %598 = vmatprep.subr.mxu0 0.0
    %599 = vmatpush2.msra.mxu0 0.0
    %600 = vmatprep.subr.mxu0 0.0
    %601 = vmatpush2.msra.mxu0 0.0
    %602 = vmatprep.subr.mxu0 0.0
    %603 = vmatpush2.msra.mxu0 0.0
    %604 = vmatprep.subr.mxu0 0.0
    %605 = vmatpush2.msra.mxu0 0.0
    %606 = vmatprep.mubr.f32.mxu0 0.0
    %607 = vmatmul.mubr.f32.gmra.mxu0 %v518
    %v608 = vpop.f32.mrf.mxu0
    %v609 = vadd.f32 %v540, %v608
    %v610 = vpop.f32.mrf.mxu0
    %611 = vdwg.mxu0
    %612 = vadd.xlane.f32.xlu0 %v609
    %v613 = vpop.xlane.xlu0 %612
    %v614 = vmul.f32 %v613, 0.03125
    %v615 = vsub.f32 %v609, %v614
    %v616 = vsel %vm509, %v615, 0.0
    %v617 = vmul.f32 %v616, %v616
    %618 = vadd.xlane.f32.xlu0 %v617
    %v619 = vpop.xlane.xlu0 %618
    %v620 = vmul.f32 %v619, 0.03125
    %v621 = vadd.f32 %v620, 1e-05
    %v622 = vrsqrt.pop %v621
    %v623 = vmul.f32 %v616, %v622
    %v624 = vmax.f32 %v623, 0.0
    %v625 = vld [vmem:[#allocation8] sm:$0xff]
    %v626 = vld [vmem:[#allocation8 + $0x8] sm:$0xff]
    %v627 = vld [vmem:[#allocation8 + $0x10] sm:$0xff]
    %v628 = vld [vmem:[#allocation8 + $0x18] sm:$0xff]
    %v629 = vld [vmem:[#allocation8 + $0x20] sm:$0xff]
    %v630 = vld [vmem:[#allocation8 + $0x28] sm:$0xff]
    %v631 = vld [vmem:[#allocation8 + $0x30] sm:$0xff]
    %v632 = vld [vmem:[#allocation8 + $0x38] sm:$0xff]
    %v633 = vld [vmem:[#allocation8 + $0x40] sm:$0xff]
    %v634 = vld [vmem:[#allocation8 + $0x48] sm:$0xff]
    %v635 = vld [vmem:[#allocation8 + $0x50] sm:$0xff]
    %v636 = vld [vmem:[#allocation8 + $0x58] sm:$0xff]
    %v637 = vld [vmem:[#allocation8 + $0x60] sm:$0xff]
    %v638 = vld [vmem:[#allocation8 + $0x68] sm:$0xff]
    %v639 = vld [vmem:[#allocation8 + $0x70] sm:$0xff]
    %v640 = vld [vmem:[#allocation8 + $0x78] sm:$0xff]
    %v641 = vld [vmem:[%s6] sm:$0x1]
    %v643 = vlaneseq
    %v644 = vshrl.u32 %v643, 7
    %v645 = vsub.s32 0, %v644
    %v646 = vrot.slane %v641, %v645
    %648 = vmatprep.subr.mxu0 0.0
    %649 = vmatpush1.msra.mxu0 %v640
    %650 = vmatprep.subr.mxu0 0.0
    %651 = vmatpush1.msra.mxu0 %v639
    %652 = vmatprep.subr.mxu0 0.0
    %653 = vmatpush1.msra.mxu0 %v638
    %654 = vmatprep.subr.mxu0 0.0
    %655 = vmatpush1.msra.mxu0 %v637
    %656 = vmatprep.subr.mxu0 0.0
    %657 = vmatpush1.msra.mxu0 %v636
    %658 = vmatprep.subr.mxu0 0.0
    %659 = vmatpush1.msra.mxu0 %v635
    %660 = vmatprep.subr.mxu0 0.0
    %661 = vmatpush1.msra.mxu0 %v634
    %662 = vmatprep.subr.mxu0 0.0
    %663 = vmatpush1.msra.mxu0 %v633
    %664 = vmatprep.subr.mxu0 0.0
    %665 = vmatpush1.msra.mxu0 %v632
    %666 = vmatprep.subr.mxu0 0.0
    %667 = vmatpush1.msra.mxu0 %v631
    %668 = vmatprep.subr.mxu0 0.0
    %669 = vmatpush1.msra.mxu0 %v630
    %670 = vmatprep.subr.mxu0 0.0
    %671 = vmatpush1.msra.mxu0 %v629
    %672 = vmatprep.subr.mxu0 0.0
    %673 = vmatpush1.msra.mxu0 %v628
    %674 = vmatprep.subr.mxu0 0.0
    %675 = vmatpush1.msra.mxu0 %v627
    %676 = vmatprep.subr.mxu0 0.0
    %677 = vmatpush1.msra.mxu0 %v626
    %678 = vmatprep.subr.mxu0 0.0
    %679 = vmatpush1.msra.mxu0 %v625
    %680 = vmatprep.subr.mxu0 0.0
    %681 = vmatpush2.msra.mxu0 0.0
    %682 = vmatprep.subr.mxu0 0.0
    %683 = vmatpush2.msra.mxu0 0.0
    %684 = vmatprep.subr.mxu0 0.0
    %685 = vmatpush2.msra.mxu0 0.0
    %686 = vmatprep.subr.mxu0 0.0
    %687 = vmatpush2.msra.mxu0 0.0
    %688 = vmatprep.subr.mxu0 0.0
    %689 = vmatpush2.msra.mxu0 0.0
    %690 = vmatprep.subr.mxu0 0.0
    %691 = vmatpush2.msra.mxu0 0.0
    %692 = vmatprep.subr.mxu0 0.0
    %693 = vmatpush2.msra.mxu0 0.0
    %694 = vmatprep.subr.mxu0 0.0
    %695 = vmatpush2.msra.mxu0 0.0
    %696 = vmatprep.subr.mxu0 0.0
    %697 = vmatpush2.msra.mxu0 0.0
    %698 = vmatprep.subr.mxu0 0.0
    %699 = vmatpush2.msra.mxu0 0.0
    %700 = vmatprep.subr.mxu0 0.0
    %701 = vmatpush2.msra.mxu0 0.0
    %702 = vmatprep.subr.mxu0 0.0
    %703 = vmatpush2.msra.mxu0 0.0
    %704 = vmatprep.subr.mxu0 0.0
    %705 = vmatpush2.msra.mxu0 0.0
    %706 = vmatprep.subr.mxu0 0.0
    %707 = vmatpush2.msra.mxu0 0.0
    %708 = vmatprep.subr.mxu0 0.0
    %709 = vmatpush2.msra.mxu0 0.0
    %710 = vmatprep.subr.mxu0 0.0
    %711 = vmatpush2.msra.mxu0 0.0
    %712 = vmatprep.mubr.f32.mxu0 0.0
    %713 = vmatmul.mubr.f32.gmra.mxu0 %v624
    %v714 = vpop.f32.mrf.mxu0
    %v715 = vadd.f32 %v646, %v714
    %v716 = vpop.f32.mrf.mxu0
    %717 = vdwg.mxu0
    %718 = vst [vmem:[#allocation10] sm:$0xff] %v715
    // Predicated region
    $region46: #{tpu_custom_call.1} parent=1 // pred_check
      _
    $region47: #{tpu_custom_call.1} parent=1 // pred_check_branch
      %720 = sbr.rel (0) target = $region49
    $region48: #{tpu_custom_call.1} parent=1 // pred_region
      %s722 = ssub.s32 128, 128
      %723 = vsyncadd [#allocation4], %s722
      %s725 = sshll.u32 [#allocation10], 4
      %s726 = int_to_ptr.vmem [resolvable:$true] %s725
      %728 = dma.vmem_to_hbm [thread:$0]  %s726, 128, %s7, [#allocation4]
    $region49: #{tpu_custom_call.1} parent=1 // pred_fallthru
      _
    // Predicated region
    $region50: #{tpu_custom_call.1} parent=1 // pred_check
      _
    $region51: #{tpu_custom_call.1} parent=1 // pred_check_branch
      %730 = sbr.rel (0) target = $region53
    $region52: #{tpu_custom_call.1} parent=1 // pred_region
      %731 = dma.done [#allocation4], 128
    $region53: #{tpu_custom_call.1} parent=1 // pred_fallthru
      _
    %732 = vsyncpa [#allocation3], 1
    %733 = vsyncpa [#allocation6], 1
    %734 = vsyncpa [#allocation9], 1
    %735 = vsyncpa [#allocation4], 1

</llo_original>
